<compile_context>
chip_gen: v7x
topology: tpu7x:2x2x1
jax: 0.10.0
libtpu: 0.0.40
codegen_flags: <defaults>
</compile_context>

<pallas_src>
import functools

import jax
import jax.numpy as jnp
from jax.experimental import pallas as pl
from jax.experimental.pallas import tpu as pltpu


def _dice_kernel(rb, ts, bc, s_total, need_lane_mask, need_row_mask,
                 yt_ref, yp_ref, o_ref, top_acc, bot_acc):
    s = pl.program_id(1)
    n_s = pl.num_programs(1)
    last = n_s - 1

    # init lane-dense accumulators on the first spatial tile of each row block
    @pl.when(s == 0)
    def _():
        top_acc[...] = jnp.zeros_like(top_acc)
        bot_acc[...] = jnp.zeros_like(bot_acc)

    def accumulate(masked):
        yt = yt_ref[...].astype(jnp.float32)   # bf16 stays bf16 in HBM
        yp = yp_ref[...].astype(jnp.float32)
        prod = yt * yp
        ssum = yt + yp
        if masked:  # only traced into the last-tile branch
            lane = jax.lax.broadcasted_iota(jnp.int32, prod.shape, 1)
            valid = (s * ts + lane) < s_total
            prod = jnp.where(valid, prod, 0.0)
            ssum = jnp.where(valid, ssum, 0.0)
        # lane-dense tree fold (rb, ts) -> (rb, 128): slices are aligned to
        # 128-lane vreg columns, so these are pure VPU adds (no XLU, no copies)
        w = ts
        while w > 128:
            w //= 2
            prod = prod[:, :w] + prod[:, w:2 * w]
            ssum = ssum[:, :w] + ssum[:, w:2 * w]
        top_acc[...] += prod
        bot_acc[...] += ssum

    if need_lane_mask:
        # unmasked fast path for all but the ragged last tile
        @pl.when(s < last)
        def _():
            accumulate(False)

        @pl.when(s == last)
        def _():
            accumulate(True)
    else:
        accumulate(False)

    # finalize on the last spatial tile: single cross-lane reduce + dice
    @pl.when(s == last)
    def _():
        top = 2.0 * jnp.sum(top_acc[...], axis=-1, keepdims=True)          # (rb, 1)
        bot = jnp.maximum(jnp.sum(bot_acc[...], axis=-1, keepdims=True),
                          jnp.float32(1e-5))                               # clamp(min=1e-5)
        dice = top / bot
        if need_row_mask:  # last row block may contain padded (garbage) rows
            r = pl.program_id(0)
            row = jax.lax.broadcasted_iota(jnp.int32, dice.shape, 0)
            dice = jnp.where(r * rb + row < bc, dice, 0.0)
        o_ref[...] = jnp.sum(dice, keepdims=True)      # per-row-block dice sum


def _round_up(x, m):
    return ((x + m - 1) // m) * m


def _pow2_floor_128(x):
    """Largest 128 * 2^k that is <= max(x, 128)."""
    v = 128
    while v * 2 <= x:
        v *= 2
    return v


def _choose_tiles(bc, s_total, itemsize, target_block_bytes):
    """Pick (row_block, spatial_tile) so each input block is ~target bytes."""
    s_pad = _round_up(s_total, 128)
    rows_full = max(8, _round_up(bc, 8))          # sublane-padded rows, all rows

    if rows_full * 128 * itemsize <= target_block_bytes or bc <= 8:
        rb = bc                                   # full-dim row block: no padding
    else:
        # even a 128-lane block would blow the budget -> block the rows (mult of 8)
        rb = max(8, (target_block_bytes // (128 * itemsize)) // 8 * 8)
        if rb >= bc:
            rb = bc

    rows_vmem = max(8, _round_up(rb, 8))
    budget_lanes = max(128, target_block_bytes // (rows_vmem * itemsize))
    # spatial tile: 128 * 2^k (enables the tree fold), capped near the padded S
    ts = min(_pow2_floor_128(budget_lanes), _pow2_floor_128(s_pad))
    return int(rb), int(ts)


def dice_loss(y_true, y_pred, *, target_block_bytes=4 * 1024 * 1024):
    """Pallas implementation of Dice().forward(y_true, y_pred)."""
    assert y_true.shape == y_pred.shape
    B, C = y_true.shape[0], y_true.shape[1]
    S = 1
    for d in y_true.shape[2:]:
        S *= int(d)
    bc = B * C

    # Free reshapes; keep the original dtype in HBM (kernel casts per tile).
    yt = y_true.reshape(bc, S)
    yp = y_pred.reshape(bc, S)

    itemsize = jnp.dtype(y_true.dtype).itemsize
    rb, ts = _choose_tiles(bc, S, itemsize, target_block_bytes)
    n_row_blocks = pl.cdiv(bc, rb)
    n_spatial = pl.cdiv(S, ts)
    need_lane_mask = (S % ts) != 0                    # ragged last spatial tile
    need_row_mask = (rb < bc) and (bc % rb != 0)      # ragged last row block

    kernel = functools.partial(_dice_kernel, rb, ts, bc, S,
                               need_lane_mask, need_row_mask)

    partials = pl.pallas_call(
        kernel,
        out_shape=jax.ShapeDtypeStruct((n_row_blocks, 1), jnp.float32),
        grid_spec=pltpu.PrefetchScalarGridSpec(
            num_scalar_prefetch=0,
            grid=(n_row_blocks, n_spatial),
            in_specs=[
                pl.BlockSpec((rb, ts), lambda r, s: (r, s)),
                pl.BlockSpec((rb, ts), lambda r, s: (r, s)),
            ],
            out_specs=pl.BlockSpec((1, 1), lambda r, s: (r, 0)),
            scratch_shapes=[
                pltpu.VMEM((rb, 128), jnp.float32),  # lane-dense sum(y_t * y_p)
                pltpu.VMEM((rb, 128), jnp.float32),  # lane-dense sum(y_t + y_p)
            ],
        ),
        compiler_params=pltpu.CompilerParams(
            # row axis shards across v7x's 2 TCs; spatial axis is the reduction
            dimension_semantics=("parallel", "arbitrary"),
            vmem_limit_bytes=48 * 1024 * 1024,       # safe on v5e/v6e/v7x
        ),
    )(yt, yp)

    # tiny epilogue: -mean over all (b, c) dice scores
    return -(jnp.sum(partials) / bc)


def _dice_reference(y_true, y_pred):
    ndims = y_pred.ndim - 2
    axes = tuple(range(2, 2 + ndims))
    top = 2.0 * (y_true * y_pred).sum(axis=axes)
    bottom = jnp.maximum((y_true + y_pred).sum(axis=axes), 1e-5)
    return -jnp.mean(top / bottom)


if __name__ == "__main__":
    key = jax.random.PRNGKey(0)
    k1, k2 = jax.random.split(key)
    # small NCHW segmentation-like inputs: batch=2, channels=4, spatial=16x16
    y_true = jax.random.uniform(k1, (2, 4, 16, 16), dtype=jnp.float32)
    y_pred = jax.random.uniform(k2, (2, 4, 16, 16), dtype=jnp.float32)

    out = dice_loss(y_true, y_pred)
    jax.block_until_ready(out)

    ref = _dice_reference(y_true, y_pred)
    assert jnp.allclose(out, ref, atol=1e-5, rtol=1e-5), (out, ref)
    print("KERNEL_OK")
</pallas_src>

<mosaic_0001>
module attributes {stable_mosaic.version = 11 : i64} {
  func.func @_dice_kernel(%arg0: i32, %arg1: i32, %arg2: memref<8x256xf32, #tpu.memory_space<vmem>>, %arg3: memref<8x256xf32, #tpu.memory_space<vmem>>, %arg4: memref<1x1xf32, #tpu.memory_space<vmem>>, %arg5: memref<8x128xf32, #tpu.memory_space<vmem>>, %arg6: memref<8x128xf32, #tpu.memory_space<vmem>>) attributes {dimension_semantics = [#tpu.dimension_semantics<parallel>, #tpu.dimension_semantics<arbitrary>], iteration_bounds = array<i64: 1, 1>, scalar_prefetch = 0 : i64, scratch_operands = 2 : i64, tpu.core_type = #tpu.core_type<tc>, window_params = [{transform_indices = @transform_0, window_bounds = array<i64: 8, 256>}, {transform_indices = @transform_1, window_bounds = array<i64: 8, 256>}, {transform_indices = @transform_2, window_bounds = array<i64: 1, 1>}]} {
    %c0_i32 = arith.constant 0 : i32
    %0 = arith.cmpi eq, %arg1, %c0_i32 : i32
    %1 = arith.extui %0 : i1 to i32
    %c0_i32_0 = arith.constant 0 : i32
    %2 = arith.cmpi ne, %1, %c0_i32_0 : i32
    scf.if %2 {
      %cst = arith.constant 0.000000e+00 : f32
      %22 = vector.broadcast %cst : f32 to vector<8x128xf32>
      %c0_14 = arith.constant 0 : index
      %c0_15 = arith.constant 0 : index
      %23 = vector.load %arg5[%c0_14, %c0_15] : memref<8x128xf32, #tpu.memory_space<vmem>>, vector<8x128xf32>
      tpu.vector_store %arg5[%c0_14, %c0_15], %22 {strides = array<i32>} : memref<8x128xf32, #tpu.memory_space<vmem>>, vector<8x128xf32>,
      %cst_16 = arith.constant 0.000000e+00 : f32
      %24 = vector.broadcast %cst_16 : f32 to vector<8x128xf32>
      %c0_17 = arith.constant 0 : index
      %c0_18 = arith.constant 0 : index
      %25 = vector.load %arg6[%c0_17, %c0_18] : memref<8x128xf32, #tpu.memory_space<vmem>>, vector<8x128xf32>
      tpu.vector_store %arg6[%c0_17, %c0_18], %24 {strides = array<i32>} : memref<8x128xf32, #tpu.memory_space<vmem>>, vector<8x128xf32>,
    } else {
    }
    %c0 = arith.constant 0 : index
    %c0_1 = arith.constant 0 : index
    %3 = vector.load %arg2[%c0, %c0_1] : memref<8x256xf32, #tpu.memory_space<vmem>>, vector<8x256xf32>
    %c0_2 = arith.constant 0 : index
    %c0_3 = arith.constant 0 : index
    %4 = vector.load %arg3[%c0_2, %c0_3] : memref<8x256xf32, #tpu.memory_space<vmem>>, vector<8x256xf32>
    %5 = arith.mulf %3, %4 : vector<8x256xf32>
    %6 = arith.addf %3, %4 : vector<8x256xf32>
    %7 = vector.extract_strided_slice %5 {offsets = [0, 0], sizes = [8, 128], strides = [1, 1]} : vector<8x256xf32> to vector<8x128xf32>
    %8 = vector.extract_strided_slice %5 {offsets = [0, 128], sizes = [8, 128], strides = [1, 1]} : vector<8x256xf32> to vector<8x128xf32>
    %9 = arith.addf %7, %8 : vector<8x128xf32>
    %10 = vector.extract_strided_slice %6 {offsets = [0, 0], sizes = [8, 128], strides = [1, 1]} : vector<8x256xf32> to vector<8x128xf32>
    %11 = vector.extract_strided_slice %6 {offsets = [0, 128], sizes = [8, 128], strides = [1, 1]} : vector<8x256xf32> to vector<8x128xf32>
    %12 = arith.addf %10, %11 : vector<8x128xf32>
    %c0_4 = arith.constant 0 : index
    %c0_5 = arith.constant 0 : index
    %13 = vector.load %arg5[%c0_4, %c0_5] : memref<8x128xf32, #tpu.memory_space<vmem>>, vector<8x128xf32>
    %14 = arith.addf %13, %9 : vector<8x128xf32>
    %c0_6 = arith.constant 0 : index
    %c0_7 = arith.constant 0 : index
    %15 = vector.load %arg5[%c0_6, %c0_7] : memref<8x128xf32, #tpu.memory_space<vmem>>, vector<8x128xf32>
    tpu.vector_store %arg5[%c0_6, %c0_7], %14 {strides = array<i32>} : memref<8x128xf32, #tpu.memory_space<vmem>>, vector<8x128xf32>,
    %c0_8 = arith.constant 0 : index
    %c0_9 = arith.constant 0 : index
    %16 = vector.load %arg6[%c0_8, %c0_9] : memref<8x128xf32, #tpu.memory_space<vmem>>, vector<8x128xf32>
    %17 = arith.addf %16, %12 : vector<8x128xf32>
    %c0_10 = arith.constant 0 : index
    %c0_11 = arith.constant 0 : index
    %18 = vector.load %arg6[%c0_10, %c0_11] : memref<8x128xf32, #tpu.memory_space<vmem>>, vector<8x128xf32>
    tpu.vector_store %arg6[%c0_10, %c0_11], %17 {strides = array<i32>} : memref<8x128xf32, #tpu.memory_space<vmem>>, vector<8x128xf32>,
    %c0_i32_12 = arith.constant 0 : i32
    %19 = arith.cmpi eq, %arg1, %c0_i32_12 : i32
    %20 = arith.extui %19 : i1 to i32
    %c0_i32_13 = arith.constant 0 : i32
    %21 = arith.cmpi ne, %20, %c0_i32_13 : i32
    scf.if %21 {
      %c0_14 = arith.constant 0 : index
      %c0_15 = arith.constant 0 : index
      %22 = vector.load %arg5[%c0_14, %c0_15] : memref<8x128xf32, #tpu.memory_space<vmem>>, vector<8x128xf32>
      %cst = arith.constant dense<0.000000e+00> : vector<8xf32>
      %23 = vector.multi_reduction <add>, %22, %cst [1] : vector<8x128xf32> to vector<8xf32>
      %24 = vector.shape_cast %23 : vector<8xf32> to vector<8x1xf32>
      %cst_16 = arith.constant 2.000000e+00 : f32
      %25 = vector.broadcast %cst_16 : f32 to vector<8x1xf32>
      %26 = arith.mulf %25, %24 : vector<8x1xf32>
      %c0_17 = arith.constant 0 : index
      %c0_18 = arith.constant 0 : index
      %27 = vector.load %arg6[%c0_17, %c0_18] : memref<8x128xf32, #tpu.memory_space<vmem>>, vector<8x128xf32>
      %cst_19 = arith.constant dense<0.000000e+00> : vector<8xf32>
      %28 = vector.multi_reduction <add>, %27, %cst_19 [1] : vector<8x128xf32> to vector<8xf32>
      %29 = vector.shape_cast %28 : vector<8xf32> to vector<8x1xf32>
      %cst_20 = arith.constant 9.99999974E-6 : f32
      %30 = vector.broadcast %cst_20 : f32 to vector<8x1xf32>
      %31 = arith.maximumf %29, %30 : vector<8x1xf32>
      %32 = arith.divf %26, %31 : vector<8x1xf32>
      %33 = vector.shape_cast %32 : vector<8x1xf32> to vector<1x8x1xf32>
      %cst_21 = arith.constant dense<0.000000e+00> : vector<1xf32>
      %34 = vector.multi_reduction <add>, %33, %cst_21 [1, 2] : vector<1x8x1xf32> to vector<1xf32>
      %35 = vector.shape_cast %34 : vector<1xf32> to vector<1x1x1xf32>
      %36 = vector.extract %35[0, 0, 0] : f32 from vector<1x1x1xf32>
      %37 = vector.broadcast %36 : f32 to vector<1x1xf32>
      %c0_22 = arith.constant 0 : index
      %c0_23 = arith.constant 0 : index
      %38 = vector.load %arg4[%c0_22, %c0_23] : memref<1x1xf32, #tpu.memory_space<vmem>>, vector<1x1xf32>
      tpu.vector_store %arg4[%c0_22, %c0_23], %37 {strides = array<i32>} : memref<1x1xf32, #tpu.memory_space<vmem>>, vector<1x1xf32>,
    } else {
    }
    return
  }
  func.func @transform_0(%arg0: i32, %arg1: i32) -> (i32, i32) {
    %c0_i32 = arith.constant 0 : i32
    return %arg0, %arg1 : i32, i32
  }
  func.func @transform_1(%arg0: i32, %arg1: i32) -> (i32, i32) {
    %c0_i32 = arith.constant 0 : i32
    return %arg0, %arg1 : i32, i32
  }
  func.func @transform_2(%arg0: i32, %arg1: i32) -> (i32, i32) {
    %c0_i32 = arith.constant 0 : i32
    %c0_i32_0 = arith.constant 0 : i32
    return %arg0, %c0_i32 : i32, i32
  }
}

</mosaic_0001>

<llo_original>
// kernel: tpu_custom_call.1
$region0: #{tpu_custom_call.1}
  #allocation0 [shape = 'u32[]', space=smem, size = 0x4, offset = 0x4, fixed_abs, tag = 'smem constant byte address 0x4 - core index']
  #allocation1 [shape = 'u32[144,128]{1,0:T(1,128)}', space=vmem, size = 0x12000, scoped, tag = 'internal scratch']
  #allocation2 [shape = 'f32[8,128]{1,0:T(8,128)}', space=vmem, size = 0x1000, scoped, tag = 'scratch operand']
  #allocation3 [shape = 'f32[8,128]{1,0:T(8,128)}', space=vmem, size = 0x1000, scoped, tag = 'scratch operand']
  %s0 = inlined_call_operand.hbm [shape: f32[8,256], index: 0, kind: input, shape index: {}]
  %s1 = inlined_call_operand.hbm [shape: f32[8,256], index: 1, kind: input, shape index: {}]
  %s2 = inlined_call_operand.hbm [shape: f32[1,1], index: 2, kind: output, shape index: {}]
  %s3 = sld [smem:[#allocation0]]
  $region34: #{tpu_custom_call.1} parent=0
    _
  %s5 = ssub.s32 1, %s3
  %s6 = scalar_select 0, %s5, %s3
  $region1: #{tpu_custom_call.1} parent=0
    #allocation4 [shape = 'u8[8192]{0}', space=vmem, size = 0x2000, scoped, tag = 'input window, operand 0, single buffered']
    #allocation5 [shape = 's32[1]{0}', space=sflag, size = 0x4, scoped, tag = 'scoped memory for tpu_custom_call.1']
    #allocation6 [shape = 's32[1]{0}', space=sflag, size = 0x4, scoped, tag = 'scoped memory for tpu_custom_call.1']
    #allocation7 [shape = 'u8[8192]{0}', space=vmem, size = 0x2000, scoped, tag = 'input window, operand 1, single buffered']
    #allocation8 [shape = 's32[1]{0}', space=sflag, size = 0x4, scoped, tag = 'scoped memory for tpu_custom_call.1']
    #allocation9 [shape = 'u8[512]{0}', space=vmem, size = 0x400, scoped, tag = 'output window, operand 0, single buffered']
    %7 = vsyncpa [#allocation5], 0
    %8 = vsyncpa [#allocation8], 0
    %9 = vsyncpa [#allocation6], 0
    // Predicated region
    $region2: #{tpu_custom_call.1} parent=1 // pred_check
      _
    $region3: #{tpu_custom_call.1} parent=1 // pred_check_branch
      %11 = sbr.rel (0) target = $region5
    $region4: #{tpu_custom_call.1} parent=1 // pred_region
      %s13 = ssub.s32 256, 256
      %14 = vsyncadd [#allocation5], %s13
      %s16 = sshll.u32 [#allocation4], 4
      %s17 = int_to_ptr.vmem [resolvable:$true] %s16
      %19 = dma.hbm_to_vmem [thread:$0]  %s0, 256, %s17, [#allocation5]
    $region5: #{tpu_custom_call.1} parent=1 // pred_fallthru
      _
    // Predicated region
    $region6: #{tpu_custom_call.1} parent=1 // pred_check
      _
    $region7: #{tpu_custom_call.1} parent=1 // pred_check_branch
      %21 = sbr.rel (0) target = $region9
    $region8: #{tpu_custom_call.1} parent=1 // pred_region
      %s23 = ssub.s32 256, 256
      %24 = vsyncadd [#allocation8], %s23
      %s26 = sshll.u32 [#allocation7], 4
      %s27 = int_to_ptr.vmem [resolvable:$true] %s26
      %29 = dma.hbm_to_vmem [thread:$0]  %s1, 256, %s27, [#allocation8]
    $region9: #{tpu_custom_call.1} parent=1 // pred_fallthru
      _
    // Predicated region
    $region10: #{tpu_custom_call.1} parent=1 // pred_check
      _
    $region11: #{tpu_custom_call.1} parent=1 // pred_check_branch
      %31 = sbr.rel (0) target = $region13
    $region12: #{tpu_custom_call.1} parent=1 // pred_region
      %32 = dma.done [#allocation5], 256
    $region13: #{tpu_custom_call.1} parent=1 // pred_fallthru
      _
    // Predicated region
    $region14: #{tpu_custom_call.1} parent=1 // pred_check
      _
    $region15: #{tpu_custom_call.1} parent=1 // pred_check_branch
      %34 = sbr.rel (0) target = $region17
    $region16: #{tpu_custom_call.1} parent=1 // pred_region
      %35 = dma.done [#allocation8], 256
    $region17: #{tpu_custom_call.1} parent=1 // pred_fallthru
      _
    %p36 = scmp.eq.s32.totalorder 0, 0
    // Predicated region
    $region18: #{tpu_custom_call.1} parent=1 // pred_check
      %p37 = pneg %p36
    $region19: #{tpu_custom_call.1} parent=1 // pred_check_branch
      %39 = sbr.rel (%p37) target = $region21
    $region20: #{tpu_custom_call.1} parent=1 // pred_region
      %40 = vst [vmem:[#allocation2] sm:$0xff] 0.0
      %41 = vst [vmem:[#allocation3] sm:$0xff] 0.0
    $region21: #{tpu_custom_call.1} parent=1 // pred_fallthru
      _
    %v42 = vld [vmem:[#allocation4] sm:$0xff]
    %v43 = vld [vmem:[#allocation4 + $0x8] sm:$0xff]
    %v44 = vld [vmem:[#allocation7] sm:$0xff]
    %v45 = vld [vmem:[#allocation7 + $0x8] sm:$0xff]
    %v46 = vmul.f32 %v42, %v44
    %v47 = vmul.f32 %v43, %v45
    %v48 = vadd.f32 %v42, %v44
    %v49 = vadd.f32 %v43, %v45
    %v50 = vadd.f32 %v46, %v47
    %v51 = vadd.f32 %v48, %v49
    %v52 = vld [vmem:[#allocation2] sm:$0xff]
    %v53 = vadd.f32 %v52, %v50
    %54 = vst [vmem:[#allocation2] sm:$0xff] %v53
    %v55 = vld [vmem:[#allocation3] sm:$0xff]
    %v56 = vadd.f32 %v55, %v51
    %57 = vst [vmem:[#allocation3] sm:$0xff] %v56
    // Predicated region
    $region22: #{tpu_custom_call.1} parent=1 // pred_check
      %p58 = pneg %p36
    $region23: #{tpu_custom_call.1} parent=1 // pred_check_branch
      %60 = sbr.rel (%p58) target = $region25
    $region24: #{tpu_custom_call.1} parent=1 // pred_region
      %v61 = vld [vmem:[#allocation2] sm:$0xff]
      %62 = vadd.xlane.f32.xlu0 %v61
      %v63 = vpop.xlane.xlu0 %62
      %v64 = vmul.f32 %v63, 2.0
      %v65 = vld [vmem:[#allocation3] sm:$0xff]
      %66 = vadd.xlane.f32.xlu0 %v65
      %v67 = vpop.xlane.xlu0 %66
      %v68 = vmax.f32 %v67, 1e-05
      %v69 = vrcp.pop %v68
      %v70 = vmul.f32 %v64, %v69
      %vm71 = vcmask 7168
      %v72 = vsel %vm71, %v70, 0.0
      %73 = vadd.xlane.f32.xlu0 %v72
      %v74 = vpop.xlane.xlu0 %73
      %v75 = vrot.slane %v74, 4
      %v76 = vadd.f32 %v74, %v75
      %v77 = vrot.slane %v76, 2
      %v78 = vadd.f32 %v76, %v77
      %v79 = vrot.slane %v78, 1
      %v80 = vadd.f32 %v78, %v79
      %s81 = vtos %v80
      %v82 = vstv %s81
      %vm83 = vcmask 0
      %84 = vst.msk [vmem:[#allocation9] sm:$0x1] %vm83, %v82
    $region25: #{tpu_custom_call.1} parent=1 // pred_fallthru
      _
    // Predicated region
    $region26: #{tpu_custom_call.1} parent=1 // pred_check
      _
    $region27: #{tpu_custom_call.1} parent=1 // pred_check_branch
      %86 = sbr.rel (0) target = $region29
    $region28: #{tpu_custom_call.1} parent=1 // pred_region
      %s88 = ssub.s32 16, 16
      %89 = vsyncadd [#allocation6], %s88
      %s91 = sshll.u32 [#allocation9], 4
      %s92 = int_to_ptr.vmem [resolvable:$true] %s91
      %94 = dma.vmem_to_hbm [thread:$0]  %s92, 16, %s2, [#allocation6]
    $region29: #{tpu_custom_call.1} parent=1 // pred_fallthru
      _
    // Predicated region
    $region30: #{tpu_custom_call.1} parent=1 // pred_check
      _
    $region31: #{tpu_custom_call.1} parent=1 // pred_check_branch
      %96 = sbr.rel (0) target = $region33
    $region32: #{tpu_custom_call.1} parent=1 // pred_region
      %97 = dma.done [#allocation6], 16
    $region33: #{tpu_custom_call.1} parent=1 // pred_fallthru
      _
    %98 = vsyncpa [#allocation5], 1
    %99 = vsyncpa [#allocation8], 1
    %100 = vsyncpa [#allocation6], 1

</llo_original>
